<compile_context>
chip_gen: v5e
topology: v5e:2x2
jax: 0.10.0
libtpu: 0.0.40
codegen_flags: <defaults>
</compile_context>

<pallas_src>
import jax
import jax.numpy as jnp
from jax.experimental import pallas as pl
from jax.experimental.pallas import tpu as pltpu

LANE = 128


def _make_linear_kernel(nb):
    """Kernel over one (nb, C, tile) activation slab.

    Blocks seen per grid step:
      x_ref: (nb, C, T)       activation slab, T = lane tile of flattened V*L
      w_ref: (c_out, C)       1x1-conv weight (resident: constant index map)
      b_ref: (c_out, 1)       bias (f32, broadcasts over lanes)
      o_ref: (nb, c_out, T)   output slab (lane-dense stores; ragged edges are
                              write-masked by Pallas)
    """

    def kernel(x_ref, w_ref, b_ref, o_ref):
        w = w_ref[...]
        bias = b_ref[...]
        # Small static unroll over the batch sub-block: each iteration is one
        # independent (c_out, C) @ (C, T) MXU matmul with f32 accumulation.
        for i in range(nb):
            acc = jnp.dot(w, x_ref[i], preferred_element_type=jnp.float32)
            o_ref[i] = (acc + bias).astype(o_ref.dtype)

    return kernel


def _vmem_limit_bytes():
    """Generation-aware scoped-VMEM limit (v7x: 64 MiB phys, v5e/v6e: 128 MiB)."""
    cap = 64 << 20  # conservative fallback = smallest per-TC VMEM (v7x)
    try:
        cap = int(pltpu.get_tpu_info().vmem_capacity_bytes)
    except Exception:
        pass
    # ~75% of physical, never above 96 MiB; leaves headroom for compiler scratch.
    return min((cap * 3) // 4, 96 << 20)


def _choose_tiling(N, C, c_out, M, dtype_bytes, vmem_limit, max_tile=8192):
    """Pick (nb, tile): batch rows per step and lane-tile width.

    VMEM model per step: 2 pipeline buffers x nb x (C + c_out) x tile x bytes
    for the streamed activation/output slabs, plus the (small, resident)
    weight/bias blocks. Per-step HBM traffic is pushed toward ~2 MiB so the
    ~0.35 us fixed grid-step overhead is amortized on all generations.
    """
    m_up = -(-M // LANE) * LANE                      # max useful tile
    per_lane_row = 2 * (C + c_out) * dtype_bytes     # double-buffered x+out, per lane per row
    fixed = 2 * (c_out * C * dtype_bytes + c_out * 4)  # weight + bias blocks
    headroom = 2 << 20
    budget = max(vmem_limit - fixed - headroom, LANE * per_lane_row)

    tile = (budget // per_lane_row) // LANE * LANE
    tile = max(LANE, min(m_up, max_tile, tile))

    target = 2 << 20                                 # ~2 MiB of HBM traffic per step
    row_bytes = (C + c_out) * tile * dtype_bytes
    nb = 1
    while (nb < min(N, 8)
           and nb * row_bytes < target
           and (nb + 1) * per_lane_row * tile + fixed + headroom <= vmem_limit):
        nb += 1
    return nb, tile


def linear_forward(x_nchw, conv_w, conv_b):
    """1x1 Conv2d forward. x: (N, C, V, L); conv_w: (c_out, C, 1, 1);
    conv_b: (c_out,). Returns (N, c_out, V, L) in the input dtype."""
    N, C, V, L = x_nchw.shape
    c_out, c_in_w, kh, kw = conv_w.shape
    assert c_in_w == C and kh == 1 and kw == 1

    # Flatten (V, L) -> M; contiguous reshape, no transpose, no copy.
    M = V * L
    x2 = x_nchw.reshape(N, C, M)

    dtype_bytes = jnp.dtype(x_nchw.dtype).itemsize
    vmem_limit = _vmem_limit_bytes()
    nb, tile = _choose_tiling(N, C, c_out, M, dtype_bytes, vmem_limit)

    # cdiv grids: ragged last blocks (batch and lane) are write-masked by Pallas.
    grid = (pl.cdiv(N, nb), pl.cdiv(M, tile))

    # Feed the MXU in the activation dtype (bf16 stays bf16); f32 bias/accum.
    w2 = conv_w[:, :, 0, 0].astype(x_nchw.dtype)          # (c_out, C)
    b2 = conv_b.astype(jnp.float32).reshape(c_out, 1)     # (c_out, 1)

    cost = pl.CostEstimate(
        flops=2 * N * M * C * c_out,
        transcendentals=0,
        bytes_accessed=(N * C * M + N * c_out * M + c_out * C + c_out) * dtype_bytes,
    )

    out = pl.pallas_call(
        _make_linear_kernel(nb),
        out_shape=jax.ShapeDtypeStruct((N, c_out, M), x_nchw.dtype),
        grid_spec=pltpu.PrefetchScalarGridSpec(
            num_scalar_prefetch=0,
            grid=grid,
            in_specs=[
                pl.BlockSpec((nb, C, tile), lambda n, t: (n, 0, t)),
                pl.BlockSpec((c_out, C), lambda n, t: (0, 0)),
                pl.BlockSpec((c_out, 1), lambda n, t: (0, 0)),
            ],
            out_specs=pl.BlockSpec((nb, c_out, tile), lambda n, t: (n, 0, t)),
        ),
        compiler_params=pltpu.CompilerParams(
            dimension_semantics=("parallel", "parallel"),
            vmem_limit_bytes=vmem_limit,
        ),
        cost_estimate=cost,
    )(x2, w2, b2)

    return out.reshape(N, c_out, V, L)


def linear_reference(x, conv_w, conv_b):
    """Pure-JAX reference mirroring the PyTorch 1x1 Conv2d forward."""
    w2d = conv_w[:, :, 0, 0]
    return jnp.einsum('oc,ncvl->novl', w2d, x) + conv_b[None, :, None, None]


if __name__ == "__main__":
    key = jax.random.PRNGKey(0)
    # Small shapes consistent with GraphWaveNet's `linear`. V*L = 208 is NOT a
    # multiple of 128, exercising the ragged-lane-block write masking path.
    N, c_in, V, L = 2, 4, 16, 13          # batch, channels, num_nodes, seq_len
    c_out = 32

    kx, kw, kb = jax.random.split(key, 3)
    x = jax.random.normal(kx, (N, c_in, V, L), jnp.float32)
    # Conv2d default init: U(-sqrt(1/fan_in), sqrt(1/fan_in)), fan_in = c_in*1*1
    bound = 1.0 / (c_in ** 0.5)
    conv_w = jax.random.uniform(kw, (c_out, c_in, 1, 1), jnp.float32, -bound, bound)
    conv_b = jax.random.uniform(kb, (c_out,), jnp.float32, -bound, bound)

    y = jax.block_until_ready(linear_forward(x, conv_w, conv_b))

    y_ref = linear_reference(x, conv_w, conv_b)
    assert y.shape == (N, c_out, V, L)
    assert jnp.allclose(y, y_ref, atol=1e-4, rtol=1e-4)
    print("KERNEL_OK")
</pallas_src>

<mosaic_0001>
module attributes {stable_mosaic.version = 11 : i64} {
  func.func @kernel(%arg0: i32, %arg1: i32, %arg2: memref<2x4x256xf32, #tpu.memory_space<vmem>>, %arg3: memref<32x4xf32, #tpu.memory_space<vmem>>, %arg4: memref<32x1xf32, #tpu.memory_space<vmem>>, %arg5: memref<2x32x256xf32, #tpu.memory_space<vmem>>) attributes {dimension_semantics = [#tpu.dimension_semantics<parallel>, #tpu.dimension_semantics<parallel>], iteration_bounds = array<i64: 1, 1>, scalar_prefetch = 0 : i64, scratch_operands = 0 : i64, tpu.core_type = #tpu.core_type<tc>, window_params = [{transform_indices = @transform_0, window_bounds = array<i64: 2, 4, 256>}, {pipeline_mode = #tpu.pipeline_mode<synchronous>, transform_indices = @transform_1, window_bounds = array<i64: 32, 4>}, {pipeline_mode = #tpu.pipeline_mode<synchronous>, transform_indices = @transform_2, window_bounds = array<i64: 32, 1>}, {transform_indices = @transform_3, window_bounds = array<i64: 2, 32, 256>}]} {
    %c0 = arith.constant 0 : index
    %c0_0 = arith.constant 0 : index
    %0 = vector.load %arg3[%c0, %c0_0] : memref<32x4xf32, #tpu.memory_space<vmem>>, vector<32x4xf32>
    %c0_1 = arith.constant 0 : index
    %c0_2 = arith.constant 0 : index
    %1 = vector.load %arg4[%c0_1, %c0_2] : memref<32x1xf32, #tpu.memory_space<vmem>>, vector<32x1xf32>
    %c0_3 = arith.constant 0 : index
    %c0_4 = arith.constant 0 : index
    %c0_5 = arith.constant 0 : index
    %2 = vector.load %arg2[%c0_3, %c0_4, %c0_5] : memref<2x4x256xf32, #tpu.memory_space<vmem>>, vector<1x4x256xf32>
    %3 = vector.shape_cast %2 : vector<1x4x256xf32> to vector<4x256xf32>
    %cst = arith.constant dense<0.000000e+00> : vector<32x256xf32>
    %4 = tpu.matmul %0, %3, %cst {dimension_numbers = #tpu.dot_dimension_numbers<[1], [0], [0], [1], [0, 0, 1, 1], [], []>} : vector<32x4xf32>, vector<4x256xf32>, vector<32x256xf32> -> vector<32x256xf32>
    %5 = vector.broadcast %1 : vector<32x1xf32> to vector<32x256xf32>
    %6 = arith.addf %4, %5 : vector<32x256xf32>
    %c0_6 = arith.constant 0 : index
    %c0_7 = arith.constant 0 : index
    %c0_8 = arith.constant 0 : index
    %7 = vector.load %arg5[%c0_6, %c0_7, %c0_8] : memref<2x32x256xf32, #tpu.memory_space<vmem>>, vector<1x32x256xf32>
    %8 = vector.shape_cast %7 : vector<1x32x256xf32> to vector<32x256xf32>
    %9 = vector.shape_cast %6 : vector<32x256xf32> to vector<1x32x256xf32>
    tpu.vector_store %arg5[%c0_6, %c0_7, %c0_8], %9 {strides = array<i32>} : memref<2x32x256xf32, #tpu.memory_space<vmem>>, vector<1x32x256xf32>,
    %c1 = arith.constant 1 : index
    %c0_9 = arith.constant 0 : index
    %c0_10 = arith.constant 0 : index
    %10 = vector.load %arg2[%c1, %c0_9, %c0_10] : memref<2x4x256xf32, #tpu.memory_space<vmem>>, vector<1x4x256xf32>
    %11 = vector.shape_cast %10 : vector<1x4x256xf32> to vector<4x256xf32>
    %cst_11 = arith.constant dense<0.000000e+00> : vector<32x256xf32>
    %12 = tpu.matmul %0, %11, %cst_11 {dimension_numbers = #tpu.dot_dimension_numbers<[1], [0], [0], [1], [0, 0, 1, 1], [], []>} : vector<32x4xf32>, vector<4x256xf32>, vector<32x256xf32> -> vector<32x256xf32>
    %13 = vector.broadcast %1 : vector<32x1xf32> to vector<32x256xf32>
    %14 = arith.addf %12, %13 : vector<32x256xf32>
    %c1_12 = arith.constant 1 : index
    %c0_13 = arith.constant 0 : index
    %c0_14 = arith.constant 0 : index
    %15 = vector.load %arg5[%c1_12, %c0_13, %c0_14] : memref<2x32x256xf32, #tpu.memory_space<vmem>>, vector<1x32x256xf32>
    %16 = vector.shape_cast %15 : vector<1x32x256xf32> to vector<32x256xf32>
    %17 = vector.shape_cast %14 : vector<32x256xf32> to vector<1x32x256xf32>
    tpu.vector_store %arg5[%c1_12, %c0_13, %c0_14], %17 {strides = array<i32>} : memref<2x32x256xf32, #tpu.memory_space<vmem>>, vector<1x32x256xf32>,
    return
  }
  func.func @transform_0(%arg0: i32, %arg1: i32) -> (i32, i32, i32) {
    %c0_i32 = arith.constant 0 : i32
    %c0_i32_0 = arith.constant 0 : i32
    return %arg0, %c0_i32, %arg1 : i32, i32, i32
  }
  func.func @transform_1(%arg0: i32, %arg1: i32) -> (i32, i32) {
    %c0_i32 = arith.constant 0 : i32
    %c0_i32_0 = arith.constant 0 : i32
    %c0_i32_1 = arith.constant 0 : i32
    return %c0_i32, %c0_i32_0 : i32, i32
  }
  func.func @transform_2(%arg0: i32, %arg1: i32) -> (i32, i32) {
    %c0_i32 = arith.constant 0 : i32
    %c0_i32_0 = arith.constant 0 : i32
    %c0_i32_1 = arith.constant 0 : i32
    return %c0_i32, %c0_i32_0 : i32, i32
  }
  func.func @transform_3(%arg0: i32, %arg1: i32) -> (i32, i32, i32) {
    %c0_i32 = arith.constant 0 : i32
    %c0_i32_0 = arith.constant 0 : i32
    return %arg0, %c0_i32, %arg1 : i32, i32, i32
  }
}

</mosaic_0001>

<llo_original>
// kernel: tpu_custom_call.1
$region0: #{tpu_custom_call.1}
  #allocation0 [shape = 'u32[]', space=smem, size = 0x4, offset = 0x4, fixed_abs, tag = 'smem constant byte address 0x4 - core index']
  #allocation1 [shape = 'u32[72,128]{1,0:T(1,128)}', space=vmem, size = 0x9000, scoped, tag = 'internal scratch']
  %s0 = inlined_call_operand.vmem [shape: f32[2,4,208], index: 0, kind: input, shape index: {}]
  %s1 = inlined_call_operand.vmem [shape: f32[32,4], index: 1, kind: input, shape index: {}]
  %s2 = inlined_call_operand.vmem [shape: f32[32,1], index: 2, kind: input, shape index: {}]
  %s3 = inlined_call_operand.hbm [shape: f32[2,32,208], index: 3, kind: output, shape index: {}]
  %s4 = sld [smem:[#allocation0]]
  $region22: #{tpu_custom_call.1} parent=0
    _
  %s6 = ssub.s32 1, %s4
  %s7 = scalar_select 0, %s6, %s4
  $region1: #{tpu_custom_call.1} parent=0
    #allocation2 [shape = 'u8[65536]{0}', space=vmem, size = 0x10000, scoped, tag = 'output window, operand 0, single buffered']
    #allocation3 [shape = 's32[1]{0}', space=sflag, size = 0x4, scoped, tag = 'scoped memory for tpu_custom_call.1']
    %8 = vsyncpa [#allocation3], 0
    // Predicated region
    $region2: #{tpu_custom_call.1} parent=1 // pred_check
      _
    $region3: #{tpu_custom_call.1} parent=1 // pred_check_branch
      %10 = sbr.rel (0) target = $region5
    $region4: #{tpu_custom_call.1} parent=1 // pred_region
      _
    $region5: #{tpu_custom_call.1} parent=1 // pred_fallthru
      _
    // Predicated region
    $region6: #{tpu_custom_call.1} parent=1 // pred_check
      _
    $region7: #{tpu_custom_call.1} parent=1 // pred_check_branch
      %12 = sbr.rel (0) target = $region9
    $region8: #{tpu_custom_call.1} parent=1 // pred_region
      _
    $region9: #{tpu_custom_call.1} parent=1 // pred_fallthru
      _
    // Predicated region
    $region10: #{tpu_custom_call.1} parent=1 // pred_check
      _
    $region11: #{tpu_custom_call.1} parent=1 // pred_check_branch
      %14 = sbr.rel (0) target = $region13
    $region12: #{tpu_custom_call.1} parent=1 // pred_region
      _
    $region13: #{tpu_custom_call.1} parent=1 // pred_fallthru
      _
    %v15 = vld [vmem:[%s1] sm:$0xff]
    %v16 = vld [vmem:[%s1 + $0x8] sm:$0xff]
    %v17 = vld [vmem:[%s1 + $0x10] sm:$0xff]
    %v18 = vld [vmem:[%s1 + $0x18] sm:$0xff]
    %v19 = vld [vmem:[%s2] sm:$0xff]
    %v20 = vld [vmem:[%s2 + $0x8] sm:$0xff]
    %v21 = vld [vmem:[%s2 + $0x10] sm:$0xff]
    %v22 = vld [vmem:[%s2 + $0x18] sm:$0xff]
    %v23 = vld [vmem:[%s0] sm:$0xff]
    %25 = vset.pattern.permute.xlu0 0
    %26 = vperm.xlu0 %25, %v19
    %v27 = vpop.permute.xlu0 %26
    %30 = vset.pattern.permute.xlu0 0
    %31 = vperm.xlu0 %30, %v20
    %v32 = vpop.permute.xlu0 %31
    %35 = vset.pattern.permute.xlu0 0
    %36 = vperm.xlu0 %35, %v21
    %v37 = vpop.permute.xlu0 %36
    %40 = vset.pattern.permute.xlu0 0
    %41 = vperm.xlu0 %40, %v22
    %v42 = vpop.permute.xlu0 %41
    %45 = vst [vmem:[#allocation1] ss:$2 sm:$0xff] %v23
    %v46 = vld.sshfl [vmem:[#allocation1] sm:$0xff pattern:$0x75316420]
    %v47 = vld.sshfl [vmem:[#allocation1 + $0x8] sm:$0xff pattern:$0x75316420]
    %vm48 = vcmask 31744
    %v50 = vsel %vm48, %v15, 0
    %v53 = vsel %vm48, %v16, 0
    %v56 = vsel %vm48, %v17, 0
    %v59 = vsel %vm48, %v18, 0
    %vm61 = vcmask 1043456
    %v62 = vsel %vm61, %v46, 0
    %v64 = vsel %vm61, %v47, 0
    %66 = vmatpush.msra.mxu0 0.0
    %67 = vmatpush.msra.mxu0 0.0
    %68 = vmatpush.msra.mxu0 0.0
    %69 = vmatpush.msra.mxu0 0.0
    %70 = vmatpush.msra.mxu0 0.0
    %71 = vmatpush.msra.mxu0 0.0
    %72 = vmatpush.msra.mxu0 0.0
    %73 = vmatpush.msra.mxu0 0.0
    %74 = vmatpush.msra.mxu0 0.0
    %75 = vmatpush.msra.mxu0 0.0
    %76 = vmatpush.msra.mxu0 0.0
    %77 = vmatpush.msra.mxu0 0.0
    %78 = vmatpush.msra.mxu0 0.0
    %79 = vmatpush.msra.mxu0 0.0
    %80 = vmatpush.msra.mxu0 0.0
    %81 = vmatpush.msra.mxu0 %v62
    %82 = vmatmul.f32.gmra.mxu0 %v50
    %v83 = vpop.f32.mrf.mxu0
    %v84 = vadd.f32 %v27, %v83
    %85 = vmatmul.f32.gmra.mxu0 %v53
    %v86 = vpop.f32.mrf.mxu0
    %v87 = vadd.f32 %v32, %v86
    %88 = vmatmul.f32.gmra.mxu0 %v56
    %v89 = vpop.f32.mrf.mxu0
    %v90 = vadd.f32 %v37, %v89
    %91 = vmatmul.f32.gmra.mxu0 %v59
    %v92 = vpop.f32.mrf.mxu0
    %v93 = vadd.f32 %v42, %v92
    %94 = vdwg.mxu0
    %95 = vmatpush.msra.mxu0 0.0
    %96 = vmatpush.msra.mxu0 0.0
    %97 = vmatpush.msra.mxu0 0.0
    %98 = vmatpush.msra.mxu0 0.0
    %99 = vmatpush.msra.mxu0 0.0
    %100 = vmatpush.msra.mxu0 0.0
    %101 = vmatpush.msra.mxu0 0.0
    %102 = vmatpush.msra.mxu0 0.0
    %103 = vmatpush.msra.mxu0 0.0
    %104 = vmatpush.msra.mxu0 0.0
    %105 = vmatpush.msra.mxu0 0.0
    %106 = vmatpush.msra.mxu0 0.0
    %107 = vmatpush.msra.mxu0 0.0
    %108 = vmatpush.msra.mxu0 0.0
    %109 = vmatpush.msra.mxu0 0.0
    %110 = vmatpush.msra.mxu0 %v64
    %111 = vmatmul.f32.gmra.mxu0 %v50
    %v112 = vpop.f32.mrf.mxu0
    %v113 = vadd.f32 %v27, %v112
    %114 = vmatmul.f32.gmra.mxu0 %v53
    %v115 = vpop.f32.mrf.mxu0
    %v116 = vadd.f32 %v32, %v115
    %117 = vmatmul.f32.gmra.mxu0 %v56
    %v118 = vpop.f32.mrf.mxu0
    %v119 = vadd.f32 %v37, %v118
    %120 = vmatmul.f32.gmra.mxu0 %v59
    %v121 = vpop.f32.mrf.mxu0
    %v122 = vadd.f32 %v42, %v121
    %123 = vdwg.mxu0
    %124 = vst [vmem:[#allocation2] sm:$0xff] %v84
    %125 = vst [vmem:[#allocation2 + $0x8] sm:$0xff] %v113
    %126 = vst [vmem:[#allocation2 + $0x10] sm:$0xff] %v87
    %127 = vst [vmem:[#allocation2 + $0x18] sm:$0xff] %v116
    %128 = vst [vmem:[#allocation2 + $0x20] sm:$0xff] %v90
    %129 = vst [vmem:[#allocation2 + $0x28] sm:$0xff] %v119
    %130 = vst [vmem:[#allocation2 + $0x30] sm:$0xff] %v93
    %131 = vst [vmem:[#allocation2 + $0x38] sm:$0xff] %v122
    %s132 = scalar_lea.vmem %s0, 8
    %v133 = vld [vmem:[%s132] sm:$0xff]
    %135 = vst [vmem:[#allocation1] ss:$2 sm:$0xff] %v133
    %v136 = vld.sshfl [vmem:[#allocation1] sm:$0xff pattern:$0x75316420]
    %v137 = vld.sshfl [vmem:[#allocation1 + $0x8] sm:$0xff pattern:$0x75316420]
    %v138 = vsel %vm61, %v136, 0
    %v140 = vsel %vm61, %v137, 0
    %142 = vmatpush.msra.mxu0 0.0
    %143 = vmatpush.msra.mxu0 0.0
    %144 = vmatpush.msra.mxu0 0.0
    %145 = vmatpush.msra.mxu0 0.0
    %146 = vmatpush.msra.mxu0 0.0
    %147 = vmatpush.msra.mxu0 0.0
    %148 = vmatpush.msra.mxu0 0.0
    %149 = vmatpush.msra.mxu0 0.0
    %150 = vmatpush.msra.mxu0 0.0
    %151 = vmatpush.msra.mxu0 0.0
    %152 = vmatpush.msra.mxu0 0.0
    %153 = vmatpush.msra.mxu0 0.0
    %154 = vmatpush.msra.mxu0 0.0
    %155 = vmatpush.msra.mxu0 0.0
    %156 = vmatpush.msra.mxu0 0.0
    %157 = vmatpush.msra.mxu0 %v138
    %158 = vmatmul.f32.gmra.mxu0 %v50
    %v159 = vpop.f32.mrf.mxu0
    %v160 = vadd.f32 %v27, %v159
    %161 = vmatmul.f32.gmra.mxu0 %v53
    %v162 = vpop.f32.mrf.mxu0
    %v163 = vadd.f32 %v32, %v162
    %164 = vmatmul.f32.gmra.mxu0 %v56
    %v165 = vpop.f32.mrf.mxu0
    %v166 = vadd.f32 %v37, %v165
    %167 = vmatmul.f32.gmra.mxu0 %v59
    %v168 = vpop.f32.mrf.mxu0
    %v169 = vadd.f32 %v42, %v168
    %170 = vdwg.mxu0
    %171 = vmatpush.msra.mxu0 0.0
    %172 = vmatpush.msra.mxu0 0.0
    %173 = vmatpush.msra.mxu0 0.0
    %174 = vmatpush.msra.mxu0 0.0
    %175 = vmatpush.msra.mxu0 0.0
    %176 = vmatpush.msra.mxu0 0.0
    %177 = vmatpush.msra.mxu0 0.0
    %178 = vmatpush.msra.mxu0 0.0
    %179 = vmatpush.msra.mxu0 0.0
    %180 = vmatpush.msra.mxu0 0.0
    %181 = vmatpush.msra.mxu0 0.0
    %182 = vmatpush.msra.mxu0 0.0
    %183 = vmatpush.msra.mxu0 0.0
    %184 = vmatpush.msra.mxu0 0.0
    %185 = vmatpush.msra.mxu0 0.0
    %186 = vmatpush.msra.mxu0 %v140
    %187 = vmatmul.f32.gmra.mxu0 %v50
    %v188 = vpop.f32.mrf.mxu0
    %v189 = vadd.f32 %v27, %v188
    %190 = vmatmul.f32.gmra.mxu0 %v53
    %v191 = vpop.f32.mrf.mxu0
    %v192 = vadd.f32 %v32, %v191
    %193 = vmatmul.f32.gmra.mxu0 %v56
    %v194 = vpop.f32.mrf.mxu0
    %v195 = vadd.f32 %v37, %v194
    %196 = vmatmul.f32.gmra.mxu0 %v59
    %v197 = vpop.f32.mrf.mxu0
    %v198 = vadd.f32 %v42, %v197
    %199 = vdwg.mxu0
    %s200 = scalar_lea.vmem [#allocation2], 64
    %201 = vst [vmem:[%s200] sm:$0xff] %v160
    %202 = vst [vmem:[%s200 + $0x8] sm:$0xff] %v189
    %203 = vst [vmem:[%s200 + $0x10] sm:$0xff] %v163
    %204 = vst [vmem:[%s200 + $0x18] sm:$0xff] %v192
    %205 = vst [vmem:[%s200 + $0x20] sm:$0xff] %v166
    %206 = vst [vmem:[%s200 + $0x28] sm:$0xff] %v195
    %207 = vst [vmem:[%s200 + $0x30] sm:$0xff] %v169
    %208 = vst [vmem:[%s200 + $0x38] sm:$0xff] %v198
    // Predicated region
    $region14: #{tpu_custom_call.1} parent=1 // pred_check
      _
    $region15: #{tpu_custom_call.1} parent=1 // pred_check_branch
      %210 = sbr.rel (0) target = $region17
    $region16: #{tpu_custom_call.1} parent=1 // pred_region
      %212 = vsyncadd [#allocation3], 0
      %s213 = sshll.u32 [#allocation2], 4
      %s214 = int_to_ptr.vmem [resolvable:$true] %s213
      %s215 = sshll.u32 %s3, 4
      %s216 = int_to_ptr.hbm [resolvable:$true] %s215
      %221 = dma.vmem_to_hbm [thread:$0]  %s214, 2048, %s216, [#allocation3], 256, 256, 16
    $region17: #{tpu_custom_call.1} parent=1 // pred_fallthru
      _
    // Predicated region
    $region18: #{tpu_custom_call.1} parent=1 // pred_check
      _
    $region19: #{tpu_custom_call.1} parent=1 // pred_check_branch
      %223 = sbr.rel (0) target = $region21
    $region20: #{tpu_custom_call.1} parent=1 // pred_region
      %225 = dma.done [#allocation3], 2048
    $region21: #{tpu_custom_call.1} parent=1 // pred_fallthru
      _
    %226 = vsyncpa [#allocation3], 1

</llo_original>
